<compile_context>
chip_gen: v7x
topology: tpu7x:2x2x1
jax: 0.10.0
libtpu: 0.0.40
codegen_flags: <defaults>
</compile_context>

<pallas_src>
import functools

import jax
import jax.numpy as jnp
from jax.experimental import pallas as pl
from jax.experimental.pallas import tpu as pltpu


def _round_up(a, m):
    return (a + m - 1) // m * m


def convbnact_kernel(x_hbm, w_ref, b_ref, o_ref, slab_ref, patch_ref, sem_ref,
                     *, K, Wp, Cp, T, L, act):
    # x_hbm:     (N, Cp, HWx)  bf16, physically zero-padded NC(HW') layout, in HBM
    # w_ref:     (C_out_p, K*K*Cp) bf16 tap-major conv weight, BN scale folded
    # b_ref:     (C_out_p, 1)  f32 folded BatchNorm bias
    # o_ref:     (1, C_out_p, T) f32 output tile
    # slab_ref:  (2, Cp, L)    bf16 double-buffered halo'd input slab
    # patch_ref: (K*K*Cp, T)   bf16 im2col patch
    # sem_ref:   (2,)          DMA semaphores
    n = pl.program_id(0)
    t = pl.program_id(1)
    nt = pl.num_programs(1)
    slot = t % 2

    def slab_copy(tile, buf):
        start = pl.multiple_of(tile * T, 128)
        return pltpu.make_async_copy(
            x_hbm.at[n, :, pl.ds(start, L)],
            slab_ref.at[buf],
            sem_ref.at[buf])

    # Prime the double buffer at the start of each batch row.  (Megacore-safe:
    # only the batch axis is "parallel", so a core never starts mid-row.)
    @pl.when(t == 0)
    def _():
        slab_copy(t, slot).start()

    # Wait for this tile's slab (issued above, or by the previous step).
    slab_copy(t, slot).wait()

    # Prefetch the next tile of this row; overlaps the compute below.
    @pl.when(t + 1 < nt)
    def _():
        slab_copy(t + 1, 1 - slot).start()

    # im2col: the layout is physically zero padded, so each of the K*K taps is
    # a plain shifted copy -- no iota / mask / select / cast passes.  Patch
    # stores land at sublane offsets that are multiples of 16 (bf16 packing).
    for di in range(K):
        for dj in range(K):
            tap = di * K + dj
            off = di * Wp + dj
            patch_ref[tap * Cp:(tap + 1) * Cp, :] = (
                slab_ref[slot, :, pl.ds(off, T)])

    # Conv (+ folded BN scale) as one bf16 MXU matmul with f32 accumulation.
    y = jnp.dot(w_ref[...], patch_ref[...],
                preferred_element_type=jnp.float32)            # (C_out_p, T)
    y = y + b_ref[...]                                         # folded BN bias

    if act in ("silu", "swish"):
        # exp on the EUP; divide as approximate reciprocal (also EUP slot).
        y = y * pl.reciprocal(1.0 + jnp.exp(-y), approx=True)
    elif act == "relu":
        y = jnp.maximum(y, 0.0)
    elif act == "lrelu":
        y = jnp.where(y >= 0.0, y, 0.1 * y)
    elif act == "hardsigmoid":
        y = jnp.clip(y / 6.0 + 0.5, 0.0, 1.0)
    # act in (None, "identity"): no-op
    o_ref[0] = y.astype(o_ref.dtype)


def convbnact_forward(x_nchw, conv_w, conv_b, bn_gamma, bn_beta, bn_mean, bn_var,
                      *, stride=1, groups=1, eps=1e-5, act="silu", norm="bn",
                      lane_tile=512):
    # TODO(synk): only stride=1, groups=1 (the module defaults) are implemented;
    # strided / grouped conv and BatchNorm training-mode batch stats are not.
    assert stride == 1 and groups == 1
    if act not in (None, "identity", "silu", "swish", "relu", "lrelu", "hardsigmoid"):
        raise AttributeError("Unsupported act type: {}".format(act))
    if norm not in (None, "bn"):
        raise NotImplementedError

    N, C, H, W = x_nchw.shape
    C_out, C_in, K, K2 = conv_w.shape
    assert C_in == C and K == K2 and K % 2 == 1
    pad = (K - 1) // 2

    # ---- fold eval-mode BatchNorm (and any conv bias) into scale/bias ------
    if norm == "bn":
        scale = bn_gamma / jnp.sqrt(bn_var + eps)
        bias = bn_beta - bn_mean * scale
        if conv_b is not None:
            bias = bias + scale * conv_b
    else:
        scale = jnp.ones((C_out,), jnp.float32)
        bias = conv_b if conv_b is not None else jnp.zeros((C_out,), jnp.float32)

    # ---- alignment / tiling parameters --------------------------------------
    Cp = _round_up(C, 16)                 # bf16 sublane packing for patch rows
    C_out_p = _round_up(C_out, 128)       # full MXU tiles / dense output rows
    Hp, Wp = H + 2 * pad, W + 2 * pad     # physically zero-padded spatial dims
    HW_valid = Hp * Wp
    T = min(_round_up(HW_valid, 128), _round_up(lane_tile, 128))   # lane tile
    HWp = _round_up(HW_valid, T)          # output lane length (multiple of T)
    NT = HWp // T
    max_off = (K - 1) * Wp + (K - 1)      # largest im2col tap offset
    halo = _round_up(max_off, 128)
    L = T + halo                          # halo'd DMA slab length per tile
    HWx = HWp + halo                      # input lane length covers last halo

    # ---- weights: tap-major, BN scale folded in f32, cast to bf16 -----------
    w = conv_w * scale[:, None, None, None]
    w = jnp.pad(w, ((0, C_out_p - C_out), (0, Cp - C), (0, 0), (0, 0)))
    w_flat = jnp.transpose(w, (0, 2, 3, 1)).reshape(C_out_p, K * K * Cp)
    w_flat = w_flat.astype(jnp.bfloat16)
    b = jnp.pad(bias, (0, C_out_p - C_out)).reshape(C_out_p, 1).astype(jnp.float32)

    # ---- input: physical zero pad (channels, spatial border, lane tail) -----
    x_p = jnp.pad(x_nchw, ((0, 0), (0, Cp - C), (pad, pad), (pad, pad)))
    x_flat = x_p.reshape(N, Cp, HW_valid)
    x_flat = jnp.pad(x_flat, ((0, 0), (0, 0), (0, HWx - HW_valid)))
    x_flat = x_flat.astype(jnp.bfloat16)          # halves input HBM traffic

    kernel = functools.partial(convbnact_kernel, K=K, Wp=Wp, Cp=Cp, T=T, L=L,
                               act=act)

    flops = 2 * N * C_out * K * K * C * H * W
    cost = pl.CostEstimate(
        flops=flops,
        transcendentals=N * C_out * H * W if act in ("silu", "swish") else 0,
        bytes_accessed=int(x_flat.size * 2 + w_flat.size * 2
                           + N * C_out_p * HWp * 4))

    out = pl.pallas_call(
        kernel,
        out_shape=jax.ShapeDtypeStruct((N, C_out_p, HWp), jnp.float32),
        grid=(N, NT),
        in_specs=[
            pl.BlockSpec(memory_space=pl.ANY),                     # x in HBM
            pl.BlockSpec((C_out_p, K * K * Cp), lambda n, t: (0, 0)),
            pl.BlockSpec((C_out_p, 1), lambda n, t: (0, 0)),
        ],
        out_specs=pl.BlockSpec((1, C_out_p, T), lambda n, t: (n, 0, t)),
        scratch_shapes=[
            pltpu.VMEM((2, Cp, L), jnp.bfloat16),        # double-buffered slab
            pltpu.VMEM((K * K * Cp, T), jnp.bfloat16),   # im2col patch
            pltpu.SemaphoreType.DMA((2,)),
        ],
        compiler_params=pltpu.CompilerParams(
            dimension_semantics=("parallel", "arbitrary"),
            # above the 16/32 MiB default scoped limits, headroom under v7x's
            # 64 MiB physical VMEM.
            vmem_limit_bytes=48 * 1024 * 1024),
        cost_estimate=cost,
    )(x_flat, w_flat, b)

    # Valid outputs live at flat index h*Wp + w (h<H, w<W); padded channels and
    # the lane tail are garbage and sliced off here.
    out = out[:, :C_out, :HW_valid].reshape(N, C_out, Hp, Wp)
    return out[:, :, :H, :W]


def convbnact_reference(x, conv_w, bn_gamma, bn_beta, bn_mean, bn_var, eps=1e-5):
    """Pure-JAX f32 reference matching the PyTorch module (eval mode)."""
    K = conv_w.shape[-1]
    pad = (K - 1) // 2
    y = jax.lax.conv_general_dilated(
        x, conv_w, window_strides=(1, 1), padding=[(pad, pad), (pad, pad)],
        dimension_numbers=("NCHW", "OIHW", "NCHW"))
    scale = bn_gamma / jnp.sqrt(bn_var + eps)
    bias = bn_beta - bn_mean * scale
    y = y * scale.reshape(1, -1, 1, 1) + bias.reshape(1, -1, 1, 1)
    return y * jax.nn.sigmoid(y)


if __name__ == "__main__":
    # Small shapes: batch=2, channels=4 -> 8, spatial=16x16, ksize=3, stride=1.
    N, C, H, W = 2, 4, 16, 16
    C_out, K = 8, 3

    key = jax.random.PRNGKey(0)
    kx, kw, kg, kb, km, kv = jax.random.split(key, 6)

    x = jax.random.normal(kx, (N, C, H, W), dtype=jnp.float32)
    # Conv2d(C, C_out, 3, stride=1, padding=1, bias=False) weight.
    conv_w = (jax.random.normal(kw, (C_out, C, K, K), dtype=jnp.float32)
              * (1.0 / jnp.sqrt(C * K * K)))

    # BatchNorm2d(C_out) eval-mode parameters.
    gamma = 1.0 + 0.1 * jax.random.normal(kg, (C_out,), dtype=jnp.float32)
    beta = 0.1 * jax.random.normal(kb, (C_out,), dtype=jnp.float32)
    running_mean = 0.1 * jax.random.normal(km, (C_out,), dtype=jnp.float32)
    running_var = jnp.abs(jax.random.normal(kv, (C_out,), dtype=jnp.float32)) + 0.5

    # lane_tile=128 -> 3 lane tiles over the 18x18 padded image, so the toy run
    # exercises the multi-tile + double-buffered-DMA path end to end.
    out = convbnact_forward(x, conv_w, None, gamma, beta, running_mean,
                            running_var, act="silu", lane_tile=128)
    out = jax.block_until_ready(out)

    ref = convbnact_reference(x, conv_w, gamma, beta, running_mean, running_var)
    assert out.shape == (N, C_out, H, W)
    err = float(jnp.max(jnp.abs(out - ref)))
    # bf16 MXU operands -> slightly loosened tolerance vs the f32 reference.
    assert jnp.allclose(out, ref, rtol=5e-2, atol=5e-2), (
        "mismatch vs reference (max abs err %g)" % err)

    print("KERNEL_OK")
</pallas_src>

<mosaic_0001>
module attributes {stable_mosaic.version = 11 : i64} {
  func.func @convbnact_kernel(%arg0: i32, %arg1: i32, %arg2: memref<2x16x512xbf16, #tpu.memory_space<any>>, %arg3: memref<128x144xbf16, #tpu.memory_space<vmem>>, %arg4: memref<128x1xf32, #tpu.memory_space<vmem>>, %arg5: memref<1x128x128xf32, #tpu.memory_space<vmem>>, %arg6: memref<2x16x256xbf16, #tpu.memory_space<vmem>>, %arg7: memref<144x128xbf16, #tpu.memory_space<vmem>>, %arg8: memref<2x!tpu.dma_semaphore, #tpu.memory_space<semaphore_mem>>) attributes {dimension_semantics = [#tpu.dimension_semantics<parallel>, #tpu.dimension_semantics<arbitrary>], iteration_bounds = array<i64: 2, 3>, scalar_prefetch = 0 : i64, scratch_operands = 3 : i64, tpu.core_type = #tpu.core_type<tc>, window_params = [{}, {pipeline_mode = #tpu.pipeline_mode<synchronous>, transform_indices = @transform_1, window_bounds = array<i64: 128, 144>}, {pipeline_mode = #tpu.pipeline_mode<synchronous>, transform_indices = @transform_2, window_bounds = array<i64: 128, 1>}, {transform_indices = @transform_3, window_bounds = array<i64: 1, 128, 128>}]} {
    %c2_i32 = arith.constant 2 : i32
    %c0_i32 = arith.constant 0 : i32
    %0 = arith.cmpi eq, %c2_i32, %c0_i32 : i32
    %c1_i32 = arith.constant 1 : i32
    %1 = arith.select %0, %c1_i32, %c2_i32 : i32
    %2 = arith.remsi %arg1, %1 : i32
    %c0_i32_0 = arith.constant 0 : i32
    %3 = arith.cmpi ne, %2, %c0_i32_0 : i32
    %c0_i32_1 = arith.constant 0 : i32
    %4 = arith.cmpi slt, %2, %c0_i32_1 : i32
    %c0_i32_2 = arith.constant 0 : i32
    %5 = arith.cmpi slt, %1, %c0_i32_2 : i32
    %6 = arith.xori %4, %5 : i1
    %7 = arith.andi %6, %3 : i1
    %8 = arith.addi %2, %1 : i32
    %9 = arith.select %7, %8, %2 : i32
    %c0_i32_3 = arith.constant 0 : i32
    %10 = arith.cmpi eq, %arg1, %c0_i32_3 : i32
    %11 = arith.extui %10 : i1 to i32
    %c0_i32_4 = arith.constant 0 : i32
    %12 = arith.cmpi ne, %11, %c0_i32_4 : i32
    scf.if %12 {
      %c128_i32_40 = arith.constant 128 : i32
      %77 = arith.muli %arg1, %c128_i32_40 : i32
      %78 = tpu.assume_multiple %77, 128 : i32
      %c0_i32_41 = arith.constant 0 : i32
      %79 = tpu.memref_slice %arg2[%arg0, %c0_i32_41, %78] : memref<2x16x512xbf16, #tpu.memory_space<any>> -> memref<1x16x256xbf16, #tpu.memory_space<any>>
      %80 = tpu.memref_squeeze %79 : memref<1x16x256xbf16, #tpu.memory_space<any>> -> memref<16x256xbf16, #tpu.memory_space<any>>
      %c0_i32_42 = arith.constant 0 : i32
      %c0_i32_43 = arith.constant 0 : i32
      %81 = tpu.memref_slice %arg6[%9, %c0_i32_42, %c0_i32_43] : memref<2x16x256xbf16, #tpu.memory_space<vmem>> -> memref<1x16x256xbf16, #tpu.memory_space<vmem>>
      %82 = tpu.memref_squeeze %81 : memref<1x16x256xbf16, #tpu.memory_space<vmem>> -> memref<16x256xbf16, #tpu.memory_space<vmem>>
      %83 = tpu.memref_slice %arg8[%9] : memref<2x!tpu.dma_semaphore, #tpu.memory_space<semaphore_mem>> -> memref<1x!tpu.dma_semaphore, #tpu.memory_space<semaphore_mem>>
      %84 = tpu.memref_squeeze %83 : memref<1x!tpu.dma_semaphore, #tpu.memory_space<semaphore_mem>> -> memref<!tpu.dma_semaphore, #tpu.memory_space<semaphore_mem>>
      tpu.enqueue_dma source(%80 : memref<16x256xbf16, #tpu.memory_space<any>>) target(%82 : memref<16x256xbf16, #tpu.memory_space<vmem>>) target_semaphore(%84 : memref<!tpu.dma_semaphore, #tpu.memory_space<semaphore_mem>>)
    } else {
    }
    %c128_i32 = arith.constant 128 : i32
    %13 = arith.muli %arg1, %c128_i32 : i32
    %14 = tpu.assume_multiple %13, 128 : i32
    %c0_i32_5 = arith.constant 0 : i32
    %15 = tpu.memref_slice %arg2[%arg0, %c0_i32_5, %14] : memref<2x16x512xbf16, #tpu.memory_space<any>> -> memref<1x16x256xbf16, #tpu.memory_space<any>>
    %16 = tpu.memref_squeeze %15 : memref<1x16x256xbf16, #tpu.memory_space<any>> -> memref<16x256xbf16, #tpu.memory_space<any>>
    %c0_i32_6 = arith.constant 0 : i32
    %c0_i32_7 = arith.constant 0 : i32
    %17 = tpu.memref_slice %arg6[%9, %c0_i32_6, %c0_i32_7] : memref<2x16x256xbf16, #tpu.memory_space<vmem>> -> memref<1x16x256xbf16, #tpu.memory_space<vmem>>
    %18 = tpu.memref_squeeze %17 : memref<1x16x256xbf16, #tpu.memory_space<vmem>> -> memref<16x256xbf16, #tpu.memory_space<vmem>>
    %19 = tpu.memref_slice %arg8[%9] : memref<2x!tpu.dma_semaphore, #tpu.memory_space<semaphore_mem>> -> memref<1x!tpu.dma_semaphore, #tpu.memory_space<semaphore_mem>>
    %20 = tpu.memref_squeeze %19 : memref<1x!tpu.dma_semaphore, #tpu.memory_space<semaphore_mem>> -> memref<!tpu.dma_semaphore, #tpu.memory_space<semaphore_mem>>
    tpu.wait_dma2 semaphore(%20 : memref<!tpu.dma_semaphore, #tpu.memory_space<semaphore_mem>>) src(%16 : memref<16x256xbf16, #tpu.memory_space<any>>) dst(%18 : memref<16x256xbf16, #tpu.memory_space<vmem>>)
    %c1_i32_8 = arith.constant 1 : i32
    %21 = arith.addi %arg1, %c1_i32_8 : i32
    %c3_i32 = arith.constant 3 : i32
    %22 = arith.cmpi slt, %21, %c3_i32 : i32
    %23 = arith.extui %22 : i1 to i32
    %c0_i32_9 = arith.constant 0 : i32
    %24 = arith.cmpi ne, %23, %c0_i32_9 : i32
    scf.if %24 {
      %c1_i32_40 = arith.constant 1 : i32
      %77 = arith.addi %arg1, %c1_i32_40 : i32
      %c1_i32_41 = arith.constant 1 : i32
      %78 = arith.subi %c1_i32_41, %9 : i32
      %c128_i32_42 = arith.constant 128 : i32
      %79 = arith.muli %77, %c128_i32_42 : i32
      %80 = tpu.assume_multiple %79, 128 : i32
      %c0_i32_43 = arith.constant 0 : i32
      %81 = tpu.memref_slice %arg2[%arg0, %c0_i32_43, %80] : memref<2x16x512xbf16, #tpu.memory_space<any>> -> memref<1x16x256xbf16, #tpu.memory_space<any>>
      %82 = tpu.memref_squeeze %81 : memref<1x16x256xbf16, #tpu.memory_space<any>> -> memref<16x256xbf16, #tpu.memory_space<any>>
      %c0_i32_44 = arith.constant 0 : i32
      %c0_i32_45 = arith.constant 0 : i32
      %83 = tpu.memref_slice %arg6[%78, %c0_i32_44, %c0_i32_45] : memref<2x16x256xbf16, #tpu.memory_space<vmem>> -> memref<1x16x256xbf16, #tpu.memory_space<vmem>>
      %84 = tpu.memref_squeeze %83 : memref<1x16x256xbf16, #tpu.memory_space<vmem>> -> memref<16x256xbf16, #tpu.memory_space<vmem>>
      %85 = tpu.memref_slice %arg8[%78] : memref<2x!tpu.dma_semaphore, #tpu.memory_space<semaphore_mem>> -> memref<1x!tpu.dma_semaphore, #tpu.memory_space<semaphore_mem>>
      %86 = tpu.memref_squeeze %85 : memref<1x!tpu.dma_semaphore, #tpu.memory_space<semaphore_mem>> -> memref<!tpu.dma_semaphore, #tpu.memory_space<semaphore_mem>>
      tpu.enqueue_dma source(%82 : memref<16x256xbf16, #tpu.memory_space<any>>) target(%84 : memref<16x256xbf16, #tpu.memory_space<vmem>>) target_semaphore(%86 : memref<!tpu.dma_semaphore, #tpu.memory_space<semaphore_mem>>)
    } else {
    }
    %25 = arith.index_cast %9 : i32 to index
    %c0 = arith.constant 0 : index
    %c0_10 = arith.constant 0 : index
    %26 = vector.load %arg6[%25, %c0, %c0_10] : memref<2x16x256xbf16, #tpu.memory_space<vmem>>, vector<1x16x128xbf16>
    %27 = vector.shape_cast %26 : vector<1x16x128xbf16> to vector<16x128xbf16>
    %c0_11 = arith.constant 0 : index
    %c0_12 = arith.constant 0 : index
    %28 = vector.load %arg7[%c0_11, %c0_12] : memref<144x128xbf16, #tpu.memory_space<vmem>>, vector<16x128xbf16>
    tpu.vector_store %arg7[%c0_11, %c0_12], %27 {strides = array<i32>} : memref<144x128xbf16, #tpu.memory_space<vmem>>, vector<16x128xbf16>,
    %29 = arith.index_cast %9 : i32 to index
    %c0_13 = arith.constant 0 : index
    %c1 = arith.constant 1 : index
    %30 = vector.load %arg6[%29, %c0_13, %c1] : memref<2x16x256xbf16, #tpu.memory_space<vmem>>, vector<1x16x128xbf16>
    %31 = vector.shape_cast %30 : vector<1x16x128xbf16> to vector<16x128xbf16>
    %c16 = arith.constant 16 : index
    %c0_14 = arith.constant 0 : index
    %32 = vector.load %arg7[%c16, %c0_14] : memref<144x128xbf16, #tpu.memory_space<vmem>>, vector<16x128xbf16>
    tpu.vector_store %arg7[%c16, %c0_14], %31 {strides = array<i32>} : memref<144x128xbf16, #tpu.memory_space<vmem>>, vector<16x128xbf16>,
    %33 = arith.index_cast %9 : i32 to index
    %c0_15 = arith.constant 0 : index
    %c2 = arith.constant 2 : index
    %34 = vector.load %arg6[%33, %c0_15, %c2] : memref<2x16x256xbf16, #tpu.memory_space<vmem>>, vector<1x16x128xbf16>
    %35 = vector.shape_cast %34 : vector<1x16x128xbf16> to vector<16x128xbf16>
    %c32 = arith.constant 32 : index
    %c0_16 = arith.constant 0 : index
    %36 = vector.load %arg7[%c32, %c0_16] : memref<144x128xbf16, #tpu.memory_space<vmem>>, vector<16x128xbf16>
    tpu.vector_store %arg7[%c32, %c0_16], %35 {strides = array<i32>} : memref<144x128xbf16, #tpu.memory_space<vmem>>, vector<16x128xbf16>,
    %37 = arith.index_cast %9 : i32 to index
    %c0_17 = arith.constant 0 : index
    %c18 = arith.constant 18 : index
    %38 = vector.load %arg6[%37, %c0_17, %c18] : memref<2x16x256xbf16, #tpu.memory_space<vmem>>, vector<1x16x128xbf16>
    %39 = vector.shape_cast %38 : vector<1x16x128xbf16> to vector<16x128xbf16>
    %c48 = arith.constant 48 : index
    %c0_18 = arith.constant 0 : index
    %40 = vector.load %arg7[%c48, %c0_18] : memref<144x128xbf16, #tpu.memory_space<vmem>>, vector<16x128xbf16>
    tpu.vector_store %arg7[%c48, %c0_18], %39 {strides = array<i32>} : memref<144x128xbf16, #tpu.memory_space<vmem>>, vector<16x128xbf16>,
    %41 = arith.index_cast %9 : i32 to index
    %c0_19 = arith.constant 0 : index
    %c19 = arith.constant 19 : index
    %42 = vector.load %arg6[%41, %c0_19, %c19] : memref<2x16x256xbf16, #tpu.memory_space<vmem>>, vector<1x16x128xbf16>
    %43 = vector.shape_cast %42 : vector<1x16x128xbf16> to vector<16x128xbf16>
    %c64 = arith.constant 64 : index
    %c0_20 = arith.constant 0 : index
    %44 = vector.load %arg7[%c64, %c0_20] : memref<144x128xbf16, #tpu.memory_space<vmem>>, vector<16x128xbf16>
    tpu.vector_store %arg7[%c64, %c0_20], %43 {strides = array<i32>} : memref<144x128xbf16, #tpu.memory_space<vmem>>, vector<16x128xbf16>,
    %45 = arith.index_cast %9 : i32 to index
    %c0_21 = arith.constant 0 : index
    %c20 = arith.constant 20 : index
    %46 = vector.load %arg6[%45, %c0_21, %c20] : memref<2x16x256xbf16, #tpu.memory_space<vmem>>, vector<1x16x128xbf16>
    %47 = vector.shape_cast %46 : vector<1x16x128xbf16> to vector<16x128xbf16>
    %c80 = arith.constant 80 : index
    %c0_22 = arith.constant 0 : index
    %48 = vector.load %arg7[%c80, %c0_22] : memref<144x128xbf16, #tpu.memory_space<vmem>>, vector<16x128xbf16>
    tpu.vector_store %arg7[%c80, %c0_22], %47 {strides = array<i32>} : memref<144x128xbf16, #tpu.memory_space<vmem>>, vector<16x128xbf16>,
    %49 = arith.index_cast %9 : i32 to index
    %c0_23 = arith.constant 0 : index
    %c36 = arith.constant 36 : index
    %50 = vector.load %arg6[%49, %c0_23, %c36] : memref<2x16x256xbf16, #tpu.memory_space<vmem>>, vector<1x16x128xbf16>
    %51 = vector.shape_cast %50 : vector<1x16x128xbf16> to vector<16x128xbf16>
    %c96 = arith.constant 96 : index
    %c0_24 = arith.constant 0 : index
    %52 = vector.load %arg7[%c96, %c0_24] : memref<144x128xbf16, #tpu.memory_space<vmem>>, vector<16x128xbf16>
    tpu.vector_store %arg7[%c96, %c0_24], %51 {strides = array<i32>} : memref<144x128xbf16, #tpu.memory_space<vmem>>, vector<16x128xbf16>,
    %53 = arith.index_cast %9 : i32 to index
    %c0_25 = arith.constant 0 : index
    %c37 = arith.constant 37 : index
    %54 = vector.load %arg6[%53, %c0_25, %c37] : memref<2x16x256xbf16, #tpu.memory_space<vmem>>, vector<1x16x128xbf16>
    %55 = vector.shape_cast %54 : vector<1x16x128xbf16> to vector<16x128xbf16>
    %c112 = arith.constant 112 : index
    %c0_26 = arith.constant 0 : index
    %56 = vector.load %arg7[%c112, %c0_26] : memref<144x128xbf16, #tpu.memory_space<vmem>>, vector<16x128xbf16>
    tpu.vector_store %arg7[%c112, %c0_26], %55 {strides = array<i32>} : memref<144x128xbf16, #tpu.memory_space<vmem>>, vector<16x128xbf16>,
    %57 = arith.index_cast %9 : i32 to index
    %c0_27 = arith.constant 0 : index
    %c38 = arith.constant 38 : index
    %58 = vector.load %arg6[%57, %c0_27, %c38] : memref<2x16x256xbf16, #tpu.memory_space<vmem>>, vector<1x16x128xbf16>
    %59 = vector.shape_cast %58 : vector<1x16x128xbf16> to vector<16x128xbf16>
    %c128 = arith.constant 128 : index
    %c0_28 = arith.constant 0 : index
    %60 = vector.load %arg7[%c128, %c0_28] : memref<144x128xbf16, #tpu.memory_space<vmem>>, vector<16x128xbf16>
    tpu.vector_store %arg7[%c128, %c0_28], %59 {strides = array<i32>} : memref<144x128xbf16, #tpu.memory_space<vmem>>, vector<16x128xbf16>,
    %c0_29 = arith.constant 0 : index
    %c0_30 = arith.constant 0 : index
    %61 = vector.load %arg3[%c0_29, %c0_30] : memref<128x144xbf16, #tpu.memory_space<vmem>>, vector<128x144xbf16>
    %c0_31 = arith.constant 0 : index
    %c0_32 = arith.constant 0 : index
    %62 = vector.load %arg7[%c0_31, %c0_32] : memref<144x128xbf16, #tpu.memory_space<vmem>>, vector<144x128xbf16>
    %cst = arith.constant dense<0.000000e+00> : vector<128x128xf32>
    %63 = tpu.matmul %61, %62, %cst {dimension_numbers = #tpu.dot_dimension_numbers<[1], [0], [0], [1], [0, 0, 1, 1], [], []>} : vector<128x144xbf16>, vector<144x128xbf16>, vector<128x128xf32> -> vector<128x128xf32>
    %c0_33 = arith.constant 0 : index
    %c0_34 = arith.constant 0 : index
    %64 = vector.load %arg4[%c0_33, %c0_34] : memref<128x1xf32, #tpu.memory_space<vmem>>, vector<128x1xf32>
    %65 = vector.broadcast %64 : vector<128x1xf32> to vector<128x128xf32>
    %66 = arith.addf %63, %65 : vector<128x128xf32>
    %cst_35 = arith.constant 0.000000e+00 : f32
    %67 = vector.broadcast %cst_35 : f32 to vector<128x128xf32>
    %68 = arith.subf %67, %66 : vector<128x128xf32>
    %69 = math.exp %68 : vector<128x128xf32>
    %cst_36 = arith.constant 1.000000e+00 : f32
    %70 = vector.broadcast %cst_36 : f32 to vector<128x128xf32>
    %71 = arith.addf %70, %69 : vector<128x128xf32>
    %72 = tpu.reciprocal %71 {approx = true} : vector<128x128xf32> -> vector<128x128xf32>
    %73 = arith.mulf %66, %72 : vector<128x128xf32>
    %c0_37 = arith.constant 0 : index
    %c0_38 = arith.constant 0 : index
    %c0_39 = arith.constant 0 : index
    %74 = vector.load %arg5[%c0_37, %c0_38, %c0_39] : memref<1x128x128xf32, #tpu.memory_space<vmem>>, vector<1x128x128xf32>
    %75 = vector.shape_cast %74 : vector<1x128x128xf32> to vector<128x128xf32>
    %76 = vector.shape_cast %73 : vector<128x128xf32> to vector<1x128x128xf32>
    tpu.vector_store %arg5[%c0_37, %c0_38, %c0_39], %76 {strides = array<i32>} : memref<1x128x128xf32, #tpu.memory_space<vmem>>, vector<1x128x128xf32>,
    return
  }
  func.func @transform_1(%arg0: i32, %arg1: i32) -> (i32, i32) {
    %c0_i32 = arith.constant 0 : i32
    %c0_i32_0 = arith.constant 0 : i32
    %c0_i32_1 = arith.constant 0 : i32
    return %c0_i32, %c0_i32_0 : i32, i32
  }
  func.func @transform_2(%arg0: i32, %arg1: i32) -> (i32, i32) {
    %c0_i32 = arith.constant 0 : i32
    %c0_i32_0 = arith.constant 0 : i32
    %c0_i32_1 = arith.constant 0 : i32
    return %c0_i32, %c0_i32_0 : i32, i32
  }
  func.func @transform_3(%arg0: i32, %arg1: i32) -> (i32, i32, i32) {
    %c0_i32 = arith.constant 0 : i32
    %c0_i32_0 = arith.constant 0 : i32
    return %arg0, %c0_i32, %arg1 : i32, i32, i32
  }
}

</mosaic_0001>

<llo_original>
// kernel: tpu_custom_call.1
$region0: #{tpu_custom_call.1}
  #allocation0 [shape = 'u32[]', space=smem, size = 0x4, offset = 0x4, fixed_abs, tag = 'smem constant byte address 0x4 - core index']
  #allocation1 [shape = 'u32[144,128]{1,0:T(1,128)}', space=vmem, size = 0x12000, scoped, tag = 'internal scratch']
  #allocation2 [shape = 'bf16[2,16,256]{2,1,0:T(16,128)(2,1)}', space=vmem, size = 0x4000, scoped, tag = 'scratch operand']
  #allocation3 [shape = 'bf16[144,128]{1,0:T(16,128)(2,1)}', space=vmem, size = 0x9000, scoped, tag = 'scratch operand']
  #allocation4 [shape = 's32[2]{0}', space=sflag, size = 0x8, scoped, tag = 'scratch operand']
  #allocation7 [shape = 's32[]', space=sflag, size = 0x4, offset = 0, fixed_abs, tag = 'sflag constant byte address 0x0 - dummy sync flag']
  #allocation8 [shape = 's32[]', space=sflag, size = 0x4, offset = 0, fixed_abs, tag = 'sflag constant byte address 0x0 - dummy sync flag']
  %s0 = inlined_call_operand.vmem [shape: bf16[2,16,512], index: 0, kind: input, shape index: {}]
  %s1 = inlined_call_operand.vmem [shape: bf16[128,144], index: 1, kind: input, shape index: {}]
  %s2 = inlined_call_operand.vmem [shape: f32[128,1], index: 2, kind: input, shape index: {}]
  %s3 = inlined_call_operand.hbm [shape: f32[2,128,384], index: 3, kind: output, shape index: {}]
  %s4 = sld [smem:[#allocation0]]
  $region123: #{tpu_custom_call.1} parent=0
    _
  %s6 = ssub.s32 1, %s4
  %s7 = scalar_select 0, %s6, %s4
  $region1: #{tpu_custom_call.1} parent=0
    #allocation5 [shape = 'u8[131072]{0}', space=vmem, size = 0x20000, scoped, tag = 'output window, operand 0']
    #allocation6 [shape = 's32[2]{0}', space=sflag, size = 0x8, scoped, tag = 'scoped memory for tpu_custom_call.1']
    %8 = vsyncpa [#allocation6], 0
    %s9 = scalar_lea.sflag [#allocation6], 1
    %10 = vsyncpa %s9, 0
    loop: start=0, step=1, limit=8
    $region2: #{tpu_custom_call.1} parent=1 // loop_pre_header
      _
    $region3: #{tpu_custom_call.1} parent=1 // loop_header
      %s12 = sphi 0, %s16
      %p13 = scmp.ge.s32.totalorder %s12, 8
      %s19 = sphi 0, %s31
      %s20 = sphi 0, %s27
      %s21 = sphi 0, %s19
      %s22 = sphi 0, %s20
      %s23 = sphi 0, %s21
      %s24 = sphi 0, %s22
      %s32 = sphi 0, %s32
      %s34 = sphi 0, %s32
      %s35 = sphi 0, %s34
      %s49 = sphi 0, %s35
      %s53 = sphi 0, %s53
      %s55 = sphi 0, %s53
      %s56 = sphi 0, %s55
      %s70 = sphi 0, %s56
      %s78 = sphi 0, %s80
      %s81 = sphi 0, %s78
      %s82 = sphi 0, %s81
      %s98 = sphi 0, %s82
    $region4: #{tpu_custom_call.1} parent=1 // loop_header_branch
      %15 = sbr.rel (%p13) target = $region8
    $region5: #{tpu_custom_call.1} parent=1 // loop_body
      %s17 = ssub.s32 %s12, 1
      %s18 = ssub.s32 %s12, 2
      %s25 = sadd.s32 1, %s20
      %p26 = scmp.ge.s32.totalorder %s25, 3
      %s27 = scalar_select %p26, 0, %s25
      %s28 = sadd.s32 1, %s19
      %s29 = scalar_select %p26, %s28, %s19
      %p30 = scmp.ge.s32.totalorder %s29, 2
      %s31 = scalar_select %p30, 0, %s29
      %s33 = sadd.s32 %s32, 1
      %p36 = scmp.eq.s32.totalorder %s12, 5
      %p37 = scmp.ne.s32.totalorder %s32, %s34
      %p38 = scmp.eq.s32.totalorder %s12, 0
      %p39 = por %p37, %p38
      %p40 = scmp.ne.s32.totalorder %s32, %s34
      %p41 = scmp.eq.s32.totalorder %s17, 5
      %p42 = por %p40, %p41
      %p43 = scmp.ne.s32.totalorder %s34, %s35
      %p44 = scmp.eq.s32.totalorder %s17, 0
      %p45 = por %p43, %p44
      %p46 = scmp.ne.s32.totalorder %s34, %s35
      %p47 = scmp.eq.s32.totalorder %s18, 5
      %p48 = por %p46, %p47
      %p50 = scmp.ne.s32.totalorder %s35, %s49
      %p51 = scmp.eq.s32.totalorder %s18, 0
      %p52 = por %p50, %p51
      %s54 = sadd.s32 %s53, 1
      %p57 = scmp.eq.s32.totalorder %s12, 5
      %p58 = scmp.ne.s32.totalorder %s53, %s55
      %p59 = scmp.eq.s32.totalorder %s12, 0
      %p60 = por %p58, %p59
      %p61 = scmp.ne.s32.totalorder %s53, %s55
      %p62 = scmp.eq.s32.totalorder %s17, 5
      %p63 = por %p61, %p62
      %p64 = scmp.ne.s32.totalorder %s55, %s56
      %p65 = scmp.eq.s32.totalorder %s17, 0
      %p66 = por %p64, %p65
      %p67 = scmp.ne.s32.totalorder %s55, %s56
      %p68 = scmp.eq.s32.totalorder %s18, 5
      %p69 = por %p67, %p68
      %p71 = scmp.ne.s32.totalorder %s56, %s70
      %p72 = scmp.eq.s32.totalorder %s18, 0
      %p73 = por %p71, %p72
      %s74 = ssub.s32 %s19, %s31
      %s75 = ssub.s32 %s20, %s27
      %s76 = sor.u32 %s74, %s75
      %p77 = scmp.eq.s32.totalorder %s76, 0
      %s79 = sadd.s32 %s78, 1
      %s80 = scalar_select %p77, %s78, %s79
      %p83 = pneg %p77
      %p84 = scmp.eq.s32.totalorder %s12, 5
      %p85 = por %p83, %p84
      %p86 = scmp.ne.s32.totalorder %s78, %s81
      %p87 = scmp.eq.s32.totalorder %s12, 0
      %p88 = por %p86, %p87
      %p89 = scmp.ne.s32.totalorder %s78, %s81
      %p90 = scmp.eq.s32.totalorder %s17, 5
      %p91 = por %p89, %p90
      %p92 = scmp.ne.s32.totalorder %s81, %s82
      %p93 = scmp.eq.s32.totalorder %s17, 0
      %p94 = por %p92, %p93
      %p95 = scmp.ne.s32.totalorder %s81, %s82
      %p96 = scmp.eq.s32.totalorder %s18, 5
      %p97 = por %p95, %p96
      %p99 = scmp.ne.s32.totalorder %s82, %s98
      %p100 = scmp.eq.s32.totalorder %s18, 0
      %p101 = por %p99, %p100
      %p102 = scmp.le.s32.totalorder 1, %s12
      %p103 = scmp.lt.s32.totalorder %s12, 7
      %p104 = pnand %p102, %p103
      %p105 = pneg %p104
      // Predicated region
      $region9: #{tpu_custom_call.1} parent=5 // pred_check
        _
      $region10: #{tpu_custom_call.1} parent=5 // pred_check_branch
        %107 = sbr.rel (%p104) target = $region12
      $region11: #{tpu_custom_call.1} parent=5 // pred_region
        %s108 = ssub.s32 %s12, 1
        // Predicated region
        $region13: #{tpu_custom_call.1} parent=11 // pred_check
          %p109 = pneg %p45
        $region14: #{tpu_custom_call.1} parent=11 // pred_check_branch
          %111 = sbr.rel (%p109) target = $region16
        $region15: #{tpu_custom_call.1} parent=11 // pred_region
          _
        $region16: #{tpu_custom_call.1} parent=11 // pred_fallthru
          _
        // Predicated region
        $region17: #{tpu_custom_call.1} parent=11 // pred_check
          %p112 = pneg %p66
        $region18: #{tpu_custom_call.1} parent=11 // pred_check_branch
          %114 = sbr.rel (%p112) target = $region20
        $region19: #{tpu_custom_call.1} parent=11 // pred_region
          _
        $region20: #{tpu_custom_call.1} parent=11 // pred_fallthru
          _
      $region12: #{tpu_custom_call.1} parent=5 // pred_fallthru
        _
      %p115 = scmp.lt.s32.totalorder %s12, 6
      // Predicated region
      $region21: #{tpu_custom_call.1} parent=5 // pred_check
        %p116 = pneg %p115
      $region22: #{tpu_custom_call.1} parent=5 // pred_check_branch
        %118 = sbr.rel (%p116) target = $region24
      $region23: #{tpu_custom_call.1} parent=5 // pred_region
        _
      $region24: #{tpu_custom_call.1} parent=5 // pred_fallthru
        _
      %p119 = scmp.le.s32.totalorder 1, %s12
      %p120 = scmp.lt.s32.totalorder %s12, 7
      %p121 = pnand %p119, %p120
      %p122 = pneg %p121
      // Predicated region
      $region25: #{tpu_custom_call.1} parent=5 // pred_check
        _
      $region26: #{tpu_custom_call.1} parent=5 // pred_check_branch
        %124 = sbr.rel (%p121) target = $region28
      $region27: #{tpu_custom_call.1} parent=5 // pred_region
        %s125 = ssub.s32 %s12, 1
        %p126 = pneg %p45
        %p127 = pneg %p42
        %p128 = pneg %p66
        %p129 = pneg %p63
        %p130 = pneg %p94
        %p131 = pneg %p91
        %s132 = sand.u32 %s81, 1
        %s133 = scalar_lea.sflag [#allocation6], %s132
        %s134 = sand.u32 %s81, 1
        %s135 = smul.addr %s134, 128
        %s136 = scalar_lea.vmem [#allocation5], %s135
        %p138 = scmp.lt.s32.totalorder %s22, 0
        %s139 = ssub.s32 0, %s22
        %s140 = scalar_select %p138, %s139, %s22
        %s141 = sand.u32 %s140, 1
        %s142 = ssub.s32 0, %s141
        %s143 = scalar_select %p138, %s142, %s141
        %p144 = scmp.ne.s32.totalorder %s143, 0
        %p145 = scmp.lt.s32.totalorder %s143, 0
        %p146 = pnand %p145, %p144
        %p147 = pneg %p146
        %s148 = sadd.s32 %s143, 2
        %s149 = scalar_select %p147, %s148, %s143
        %p150 = scmp.eq.s32.totalorder %s22, 0
        // Predicated region
        $region29: #{tpu_custom_call.1} parent=27 // pred_check
          %p151 = pneg %p150
        $region30: #{tpu_custom_call.1} parent=27 // pred_check_branch
          %153 = sbr.rel (%p151) target = $region32
        $region31: #{tpu_custom_call.1} parent=27 // pred_region
          %s154 = smul.u32 %s22, 128
          %s155 = sshra.s32 %s154, 7
          %s156 = sand.u32 %s154, 127
          %s157 = smul.u32 %s21, 8
          %s158 = sadd.s32 %s155, %s157
          %s159 = smul.addr %s158, 4
          %s160 = scalar_lea.vmem %s0, %s159
          %s161 = smul.u32 %s149, 2
          %s162 = smul.addr %s161, 8
          %s163 = scalar_lea.vmem [#allocation2], %s162
          %s164 = scalar_lea.sflag [#allocation4], %s149
          %p166 = scmp.lt.u32.totalorder 4, 8
          %p167 = pneg %p166
          // Predicated region
          $region33: #{tpu_custom_call.1} parent=31 // pred_check
            _
          $region34: #{tpu_custom_call.1} parent=31 // pred_check_branch
            %169 = sbr.rel (%p166) target = $region36
          $region35: #{tpu_custom_call.1} parent=31 // pred_region
            %s190 = sand.u32 4, 7
            %p191 = scmp.eq.s32.totalorder %s190, 0
            %p192 = pneg %p191
            // Predicated region
            $region48: #{tpu_custom_call.1} parent=35 // pred_check
              _
            $region49: #{tpu_custom_call.1} parent=35 // pred_check_branch
              %194 = sbr.rel (%p191) target = $region51
            $region50: #{tpu_custom_call.1} parent=35 // pred_region
              %s195 = sand.u32 4, 7
              %s196 = ssub.s32 4, %s195
              %s197 = scalar_lea.vmem %s160, %s196
              %s198 = ssub.s32 4, %s195
              %s199 = scalar_lea.vmem %s163, %s198 [#allocation2]
              loop: start=0, step=1, limit=1
              $region52: #{tpu_custom_call.1} parent=50 // loop_pre_header
                _
              $region53: #{tpu_custom_call.1} parent=50 // loop_header
                %s201 = sphi 0, %s205
                %p202 = scmp.ge.s32.totalorder %s201, 1
                %s206 = sphi %s160, %s160
                %s207 = sphi %s163, %s163
              $region54: #{tpu_custom_call.1} parent=50 // loop_header_branch
                %204 = sbr.rel (%p202) target = $region58
              $region55: #{tpu_custom_call.1} parent=50 // loop_body
                _
              $region56: #{tpu_custom_call.1} parent=50 // loop_footer
                %s205 = sadd.s32 1, %s201
              $region57: #{tpu_custom_call.1} parent=50 // loop_footer_branch
                %200 = sbr.rel target = $region53
              $region58: #{tpu_custom_call.1} parent=50 // loop_exit
                _
              %s208 = sshllo.u32 0, %s195
              loop: start=0, step=1, limit=1
              $region59: #{tpu_custom_call.1} parent=50 // loop_pre_header
                _
              $region60: #{tpu_custom_call.1} parent=50 // loop_header
                %s210 = sphi 0, %s214
                %p211 = scmp.ge.s32.totalorder %s210, 1
                %s215 = sphi %s197, %s197
                %s216 = sphi %s199, %s199
              $region61: #{tpu_custom_call.1} parent=50 // loop_header_branch
                %213 = sbr.rel (%p211) target = $region65
              $region62: #{tpu_custom_call.1} parent=50 // loop_body
                %v217 = vld [vmem:[%s215] sm:%s208]
                %218 = vst [vmem:[%s216] sm:%s208] %v217
                %v219 = vld [vmem:[%s215 + $0x10] sm:%s208]
                %220 = vst [vmem:[%s216 + $0x4] sm:%s208] %v219
                %v221 = vld [vmem:[%s215 + $0x4] sm:%s208]
                %222 = vst [vmem:[%s216 + $0x8] sm:%s208] %v221
                %v223 = vld [vmem:[%s215 + $0x14] sm:%s208]
                %224 = vst [vmem:[%s216 + $0xc] sm:%s208] %v223
              $region63: #{tpu_custom_call.1} parent=50 // loop_footer
                %s214 = sadd.s32 1, %s210
              $region64: #{tpu_custom_call.1} parent=50 // loop_footer_branch
                %209 = sbr.rel target = $region60
              $region65: #{tpu_custom_call.1} parent=50 // loop_exit
                _
            $region51: #{tpu_custom_call.1} parent=35 // pred_fallthru
              _
          $region36: #{tpu_custom_call.1} parent=31 // pred_fallthru
            _
          // Predicated region
          $region37: #{tpu_custom_call.1} parent=31 // pred_check
            %p170 = pneg %p166
          $region38: #{tpu_custom_call.1} parent=31 // pred_check_branch
            %172 = sbr.rel (%p170) target = $region40
          $region39: #{tpu_custom_call.1} parent=31 // pred_region
            %s173 = sshllo.u32 0, 4
            loop: start=0, step=1, limit=1
            $region41: #{tpu_custom_call.1} parent=39 // loop_pre_header
              _
            $region42: #{tpu_custom_call.1} parent=39 // loop_header
              %s175 = sphi 0, %s179
              %p176 = scmp.ge.s32.totalorder %s175, 1
              %s180 = sphi %s160, %s160
              %s181 = sphi %s163, %s163
            $region43: #{tpu_custom_call.1} parent=39 // loop_header_branch
              %178 = sbr.rel (%p176) target = $region47
            $region44: #{tpu_custom_call.1} parent=39 // loop_body
              %v182 = vld [vmem:[%s180] sm:%s173]
              %183 = vst [vmem:[%s181] sm:%s173] %v182
              %v184 = vld [vmem:[%s180 + $0x10] sm:%s173]
              %185 = vst [vmem:[%s181 + $0x4] sm:%s173] %v184
              %v186 = vld [vmem:[%s180 + $0x4] sm:%s173]
              %187 = vst [vmem:[%s181 + $0x8] sm:%s173] %v186
              %v188 = vld [vmem:[%s180 + $0x14] sm:%s173]
              %189 = vst [vmem:[%s181 + $0xc] sm:%s173] %v188
            $region45: #{tpu_custom_call.1} parent=39 // loop_footer
              %s179 = sadd.s32 1, %s175
            $region46: #{tpu_custom_call.1} parent=39 // loop_footer_branch
              %174 = sbr.rel target = $region42
            $region47: #{tpu_custom_call.1} parent=39 // loop_exit
              _
          $region40: #{tpu_custom_call.1} parent=31 // pred_fallthru
            _
          // Predicated region
          $region66: #{tpu_custom_call.1} parent=31 // pred_check
            _
          $region67: #{tpu_custom_call.1} parent=31 // pred_check_branch
            %227 = sbr.rel (0) target = $region69
          $region68: #{tpu_custom_call.1} parent=31 // pred_region
            %228 = vsyncadd %s164, 256
          $region69: #{tpu_custom_call.1} parent=31 // pred_fallthru
            _
        $region32: #{tpu_custom_call.1} parent=27 // pred_fallthru
          _
        %s229 = smul.u32 %s22, 128
        %s230 = smul.u32 %s149, 2
        %s231 = smul.addr %s230, 8
        %s232 = scalar_lea.vmem [#allocation2], %s231
        %s233 = scalar_lea.sflag [#allocation4], %s149
        %s234 = smul.u32 4, 2
        %s235 = smul.u32 %s234, 2
        %s236 = sshll.u32 %s235, 4
        %237 = dma.done %s233, %s236
        %s238 = sadd.s32 %s22, 1
        %p239 = scmp.lt.s32.totalorder %s238, 3
        // Predicated region
        $region70: #{tpu_custom_call.1} parent=27 // pred_check
          %p240 = pneg %p239
        $region71: #{tpu_custom_call.1} parent=27 // pred_check_branch
          %242 = sbr.rel (%p240) target = $region73
        $region72: #{tpu_custom_call.1} parent=27 // pred_region
          %s243 = ssub.s32 1, %s149
          %s244 = smul.u32 %s238, 128
          %s245 = sshra.s32 %s244, 7
          %s246 = sand.u32 %s244, 127
          %s247 = smul.u32 %s21, 8
          %s248 = sadd.s32 %s245, %s247
          %s249 = smul.addr %s248, 4
          %s250 = scalar_lea.vmem %s0, %s249
          %s251 = smul.u32 %s243, 2
          %s252 = smul.addr %s251, 8
          %s253 = scalar_lea.vmem [#allocation2], %s252
          %s254 = scalar_lea.sflag [#allocation4], %s243
          %p256 = scmp.lt.u32.totalorder 4, 8
          %p257 = pneg %p256
          // Predicated region
          $region74: #{tpu_custom_call.1} parent=72 // pred_check
            _
          $region75: #{tpu_custom_call.1} parent=72 // pred_check_branch
            %259 = sbr.rel (%p256) target = $region77
          $region76: #{tpu_custom_call.1} parent=72 // pred_region
            %s280 = sand.u32 4, 7
            %p281 = scmp.eq.s32.totalorder %s280, 0
            %p282 = pneg %p281
            // Predicated region
            $region89: #{tpu_custom_call.1} parent=76 // pred_check
              _
            $region90: #{tpu_custom_call.1} parent=76 // pred_check_branch
              %284 = sbr.rel (%p281) target = $region92
            $region91: #{tpu_custom_call.1} parent=76 // pred_region
              %s285 = sand.u32 4, 7
              %s286 = ssub.s32 4, %s285
              %s287 = scalar_lea.vmem %s250, %s286
              %s288 = ssub.s32 4, %s285
              %s289 = scalar_lea.vmem %s253, %s288 [#allocation2]
              loop: start=0, step=1, limit=1
              $region93: #{tpu_custom_call.1} parent=91 // loop_pre_header
                _
              $region94: #{tpu_custom_call.1} parent=91 // loop_header
                %s291 = sphi 0, %s295
                %p292 = scmp.ge.s32.totalorder %s291, 1
                %s296 = sphi %s250, %s250
                %s297 = sphi %s253, %s253
              $region95: #{tpu_custom_call.1} parent=91 // loop_header_branch
                %294 = sbr.rel (%p292) target = $region99
              $region96: #{tpu_custom_call.1} parent=91 // loop_body
                _
              $region97: #{tpu_custom_call.1} parent=91 // loop_footer
                %s295 = sadd.s32 1, %s291
              $region98: #{tpu_custom_call.1} parent=91 // loop_footer_branch
                %290 = sbr.rel target = $region94
              $region99: #{tpu_custom_call.1} parent=91 // loop_exit
                _
              %s298 = sshllo.u32 0, %s285
              loop: start=0, step=1, limit=1
              $region100: #{tpu_custom_call.1} parent=91 // loop_pre_header
                _
              $region101: #{tpu_custom_call.1} parent=91 // loop_header
                %s300 = sphi 0, %s304
                %p301 = scmp.ge.s32.totalorder %s300, 1
                %s305 = sphi %s287, %s287
                %s306 = sphi %s289, %s289
              $region102: #{tpu_custom_call.1} parent=91 // loop_header_branch
                %303 = sbr.rel (%p301) target = $region106
              $region103: #{tpu_custom_call.1} parent=91 // loop_body
                %v307 = vld [vmem:[%s305] sm:%s298]
                %308 = vst [vmem:[%s306] sm:%s298] %v307
                %v309 = vld [vmem:[%s305 + $0x10] sm:%s298]
                %310 = vst [vmem:[%s306 + $0x4] sm:%s298] %v309
                %v311 = vld [vmem:[%s305 + $0x4] sm:%s298]
                %312 = vst [vmem:[%s306 + $0x8] sm:%s298] %v311
                %v313 = vld [vmem:[%s305 + $0x14] sm:%s298]
                %314 = vst [vmem:[%s306 + $0xc] sm:%s298] %v313
              $region104: #{tpu_custom_call.1} parent=91 // loop_footer
                %s304 = sadd.s32 1, %s300
              $region105: #{tpu_custom_call.1} parent=91 // loop_footer_branch
                %299 = sbr.rel target = $region101
              $region106: #{tpu_custom_call.1} parent=91 // loop_exit
                _
            $region92: #{tpu_custom_call.1} parent=76 // pred_fallthru
              _
          $region77: #{tpu_custom_call.1} parent=72 // pred_fallthru
            _
          // Predicated region
          $region78: #{tpu_custom_call.1} parent=72 // pred_check
            %p260 = pneg %p256
          $region79: #{tpu_custom_call.1} parent=72 // pred_check_branch
            %262 = sbr.rel (%p260) target = $region81
          $region80: #{tpu_custom_call.1} parent=72 // pred_region
            %s263 = sshllo.u32 0, 4
            loop: start=0, step=1, limit=1
            $region82: #{tpu_custom_call.1} parent=80 // loop_pre_header
              _
            $region83: #{tpu_custom_call.1} parent=80 // loop_header
              %s265 = sphi 0, %s269
              %p266 = scmp.ge.s32.totalorder %s265, 1
              %s270 = sphi %s250, %s250
              %s271 = sphi %s253, %s253
            $region84: #{tpu_custom_call.1} parent=80 // loop_header_branch
              %268 = sbr.rel (%p266) target = $region88
            $region85: #{tpu_custom_call.1} parent=80 // loop_body
              %v272 = vld [vmem:[%s270] sm:%s263]
              %273 = vst [vmem:[%s271] sm:%s263] %v272
              %v274 = vld [vmem:[%s270 + $0x10] sm:%s263]
              %275 = vst [vmem:[%s271 + $0x4] sm:%s263] %v274
              %v276 = vld [vmem:[%s270 + $0x4] sm:%s263]
              %277 = vst [vmem:[%s271 + $0x8] sm:%s263] %v276
              %v278 = vld [vmem:[%s270 + $0x14] sm:%s263]
              %279 = vst [vmem:[%s271 + $0xc] sm:%s263] %v278
            $region86: #{tpu_custom_call.1} parent=80 // loop_footer
              %s269 = sadd.s32 1, %s265
            $region87: #{tpu_custom_call.1} parent=80 // loop_footer_branch
              %264 = sbr.rel target = $region83
            $region88: #{tpu_custom_call.1} parent=80 // loop_exit
              _
          $region81: #{tpu_custom_call.1} parent=72 // pred_fallthru
            _
          // Predicated region
          $region107: #{tpu_custom_call.1} parent=72 // pred_check
            _
          $region108: #{tpu_custom_call.1} parent=72 // pred_check_branch
            %317 = sbr.rel (0) target = $region110
          $region109: #{tpu_custom_call.1} parent=72 // pred_region
            %318 = vsyncadd %s254, 256
          $region110: #{tpu_custom_call.1} parent=72 // pred_fallthru
            _
        $region73: #{tpu_custom_call.1} parent=27 // pred_fallthru
          _
        %v319 = vld [vmem:[%s232] sm:$0xff]
        %320 = vst [vmem:[#allocation3] sm:$0xff] %v319
        %v321 = vld [vmem:[%s232] sm:$0xff]
        %v322 = vld [vmem:[%s232 + $0x8] sm:$0xff]
        %325 = vrot.lane.b32.xlu0 %v321, 127
        %v326 = vpop.permute.xlu0 %325
        %327 = vrot.lane.b32.xlu0 %v322, 127
        %v328 = vpop.permute.xlu0 %327
        %vm329 = vcmask 1039360
        %v330 = vsel %vm329, %v326, %v328
        %332 = vst [vmem:[#allocation3 + $0x8] sm:$0xff] %v330
        %v333 = vld [vmem:[%s232] sm:$0xff]
        %v334 = vld [vmem:[%s232 + $0x8] sm:$0xff]
        %337 = vrot.lane.b32.xlu0 %v333, 126
        %v338 = vpop.permute.xlu0 %337
        %339 = vrot.lane.b32.xlu0 %v334, 126
        %v340 = vpop.permute.xlu0 %339
        %vm341 = vcmask 1031168
        %v342 = vsel %vm341, %v338, %v340
        %344 = vst [vmem:[#allocation3 + $0x10] sm:$0xff] %v342
        %v345 = vld [vmem:[%s232] sm:$0xff]
        %v346 = vld [vmem:[%s232 + $0x8] sm:$0xff]
        %349 = vrot.lane.b32.xlu0 %v345, 110
        %v350 = vpop.permute.xlu0 %349
        %351 = vrot.lane.b32.xlu0 %v346, 110
        %v352 = vpop.permute.xlu0 %351
        %vm353 = vcmask 900096
        %v354 = vsel %vm353, %v350, %v352
        %356 = vst [vmem:[#allocation3 + $0x18] sm:$0xff] %v354
        %v357 = vld [vmem:[%s232] sm:$0xff]
        %v358 = vld [vmem:[%s232 + $0x8] sm:$0xff]
        %361 = vrot.lane.b32.xlu0 %v357, 109
        %v362 = vpop.permute.xlu0 %361
        %363 = vrot.lane.b32.xlu0 %v358, 109
        %v364 = vpop.permute.xlu0 %363
        %vm365 = vcmask 891904
        %v366 = vsel %vm365, %v362, %v364
        %368 = vst [vmem:[#allocation3 + $0x20] sm:$0xff] %v366
        %v369 = vld [vmem:[%s232] sm:$0xff]
        %v370 = vld [vmem:[%s232 + $0x8] sm:$0xff]
        %373 = vrot.lane.b32.xlu0 %v369, 108
        %v374 = vpop.permute.xlu0 %373
        %375 = vrot.lane.b32.xlu0 %v370, 108
        %v376 = vpop.permute.xlu0 %375
        %vm377 = vcmask 883712
        %v378 = vsel %vm377, %v374, %v376
        %380 = vst [vmem:[#allocation3 + $0x28] sm:$0xff] %v378
        %v381 = vld [vmem:[%s232] sm:$0xff]
        %v382 = vld [vmem:[%s232 + $0x8] sm:$0xff]
        %385 = vrot.lane.b32.xlu0 %v381, 92
        %v386 = vpop.permute.xlu0 %385
        %387 = vrot.lane.b32.xlu0 %v382, 92
        %v388 = vpop.permute.xlu0 %387
        %vm389 = vcmask 752640
        %v390 = vsel %vm389, %v386, %v388
        %392 = vst [vmem:[#allocation3 + $0x30] sm:$0xff] %v390
        %v393 = vld [vmem:[%s232] sm:$0xff]
        %v394 = vld [vmem:[%s232 + $0x8] sm:$0xff]
        %397 = vrot.lane.b32.xlu0 %v393, 91
        %v398 = vpop.permute.xlu0 %397
        %399 = vrot.lane.b32.xlu0 %v394, 91
        %v400 = vpop.permute.xlu0 %399
        %vm401 = vcmask 744448
        %v402 = vsel %vm401, %v398, %v400
        %404 = vst [vmem:[#allocation3 + $0x38] sm:$0xff] %v402
        %v405 = vld [vmem:[%s232] sm:$0xff]
        %v406 = vld [vmem:[%s232 + $0x8] sm:$0xff]
        %409 = vrot.lane.b32.xlu0 %v405, 90
        %v410 = vpop.permute.xlu0 %409
        %411 = vrot.lane.b32.xlu0 %v406, 90
        %v412 = vpop.permute.xlu0 %411
        %vm413 = vcmask 736256
        %v414 = vsel %vm413, %v410, %v412
        %416 = vst [vmem:[#allocation3 + $0x40] sm:$0xff] %v414
        %v417 = vld [vmem:[%s1] sm:$0xff]
        %v418 = vld [vmem:[%s1 + $0x8] sm:$0xff]
        %v419 = vld [vmem:[%s1 + $0x10] sm:$0xff]
        %v420 = vld [vmem:[%s1 + $0x18] sm:$0xff]
        %v421 = vld [vmem:[%s1 + $0x20] sm:$0xff]
        %v422 = vld [vmem:[%s1 + $0x28] sm:$0xff]
        %v423 = vld [vmem:[%s1 + $0x30] sm:$0xff]
        %v424 = vld [vmem:[%s1 + $0x38] sm:$0xff]
        %v425 = vld [vmem:[%s1 + $0x40] sm:$0xff]
        %v426 = vld [vmem:[%s1 + $0x48] sm:$0xff]
        %v427 = vld [vmem:[%s1 + $0x50] sm:$0xff]
        %v428 = vld [vmem:[%s1 + $0x58] sm:$0xff]
        %v429 = vld [vmem:[%s1 + $0x60] sm:$0xff]
        %v430 = vld [vmem:[%s1 + $0x68] sm:$0xff]
        %v431 = vld [vmem:[%s1 + $0x70] sm:$0xff]
        %v432 = vld [vmem:[%s1 + $0x78] sm:$0xff]
        %v433 = vld [vmem:[#allocation3] sm:$0xff]
        %v434 = vld [vmem:[#allocation3 + $0x8] sm:$0xff]
        %v435 = vld [vmem:[#allocation3 + $0x10] sm:$0xff]
        %v436 = vld [vmem:[#allocation3 + $0x18] sm:$0xff]
        %v437 = vld [vmem:[#allocation3 + $0x20] sm:$0xff]
        %v438 = vld [vmem:[#allocation3 + $0x28] sm:$0xff]
        %v439 = vld [vmem:[#allocation3 + $0x30] sm:$0xff]
        %v440 = vld [vmem:[#allocation3 + $0x38] sm:$0xff]
        %v441 = vld [vmem:[#allocation3 + $0x40] sm:$0xff]
        %v442 = vld [vmem:[%s2] sm:$0xff]
        %v443 = vld [vmem:[%s2 + $0x8] sm:$0xff]
        %v444 = vld [vmem:[%s2 + $0x10] sm:$0xff]
        %v445 = vld [vmem:[%s2 + $0x18] sm:$0xff]
        %v446 = vld [vmem:[%s2 + $0x20] sm:$0xff]
        %v447 = vld [vmem:[%s2 + $0x28] sm:$0xff]
        %v448 = vld [vmem:[%s2 + $0x30] sm:$0xff]
        %v449 = vld [vmem:[%s2 + $0x38] sm:$0xff]
        %v450 = vld [vmem:[%s2 + $0x40] sm:$0xff]
        %v451 = vld [vmem:[%s2 + $0x48] sm:$0xff]
        %v452 = vld [vmem:[%s2 + $0x50] sm:$0xff]
        %v453 = vld [vmem:[%s2 + $0x58] sm:$0xff]
        %v454 = vld [vmem:[%s2 + $0x60] sm:$0xff]
        %v455 = vld [vmem:[%s2 + $0x68] sm:$0xff]
        %v456 = vld [vmem:[%s2 + $0x70] sm:$0xff]
        %v457 = vld [vmem:[%s2 + $0x78] sm:$0xff]
        %459 = vset.pattern.permute.xlu0 0
        %460 = vperm.xlu0 %459, %v442
        %v461 = vpop.permute.xlu0 %460
        %464 = vset.pattern.permute.xlu0 0
        %465 = vperm.xlu0 %464, %v443
        %v466 = vpop.permute.xlu0 %465
        %469 = vset.pattern.permute.xlu0 0
        %470 = vperm.xlu0 %469, %v444
        %v471 = vpop.permute.xlu0 %470
        %474 = vset.pattern.permute.xlu0 0
        %475 = vperm.xlu0 %474, %v445
        %v476 = vpop.permute.xlu0 %475
        %479 = vset.pattern.permute.xlu0 0
        %480 = vperm.xlu0 %479, %v446
        %v481 = vpop.permute.xlu0 %480
        %484 = vset.pattern.permute.xlu0 0
        %485 = vperm.xlu0 %484, %v447
        %v486 = vpop.permute.xlu0 %485
        %489 = vset.pattern.permute.xlu0 0
        %490 = vperm.xlu0 %489, %v448
        %v491 = vpop.permute.xlu0 %490
        %494 = vset.pattern.permute.xlu0 0
        %495 = vperm.xlu0 %494, %v449
        %v496 = vpop.permute.xlu0 %495
        %499 = vset.pattern.permute.xlu0 0
        %500 = vperm.xlu0 %499, %v450
        %v501 = vpop.permute.xlu0 %500
        %504 = vset.pattern.permute.xlu0 0
        %505 = vperm.xlu0 %504, %v451
        %v506 = vpop.permute.xlu0 %505
        %509 = vset.pattern.permute.xlu0 0
        %510 = vperm.xlu0 %509, %v452
        %v511 = vpop.permute.xlu0 %510
        %514 = vset.pattern.permute.xlu0 0
        %515 = vperm.xlu0 %514, %v453
        %v516 = vpop.permute.xlu0 %515
        %519 = vset.pattern.permute.xlu0 0
        %520 = vperm.xlu0 %519, %v454
        %v521 = vpop.permute.xlu0 %520
        %524 = vset.pattern.permute.xlu0 0
        %525 = vperm.xlu0 %524, %v455
        %v526 = vpop.permute.xlu0 %525
        %529 = vset.pattern.permute.xlu0 0
        %530 = vperm.xlu0 %529, %v456
        %v531 = vpop.permute.xlu0 %530
        %534 = vset.pattern.permute.xlu0 0
        %535 = vperm.xlu0 %534, %v457
        %v536 = vpop.permute.xlu0 %535
        %v554 = vunpack.c.l.b16 %v417
        %v555 = vunpack.c.h.b16 %v417
        %v556 = vunpack.c.l.b16 %v418
        %v557 = vunpack.c.h.b16 %v418
        %v558 = vunpack.c.l.b16 %v419
        %v559 = vunpack.c.h.b16 %v419
        %v560 = vunpack.c.l.b16 %v420
        %v561 = vunpack.c.h.b16 %v420
        %v562 = vunpack.c.l.b16 %v421
        %v563 = vunpack.c.h.b16 %v421
        %v564 = vunpack.c.l.b16 %v422
        %v565 = vunpack.c.h.b16 %v422
        %v566 = vunpack.c.l.b16 %v423
        %v567 = vunpack.c.h.b16 %v423
        %v568 = vunpack.c.l.b16 %v424
        %v569 = vunpack.c.h.b16 %v424
        %v570 = vunpack.c.l.b16 %v425
        %v571 = vunpack.c.h.b16 %v425
        %v572 = vunpack.c.l.b16 %v426
        %v573 = vunpack.c.h.b16 %v426
        %v574 = vunpack.c.l.b16 %v427
        %v575 = vunpack.c.h.b16 %v427
        %v576 = vunpack.c.l.b16 %v428
        %v577 = vunpack.c.h.b16 %v428
        %v578 = vunpack.c.l.b16 %v429
        %v579 = vunpack.c.h.b16 %v429
        %v580 = vunpack.c.l.b16 %v430
        %v581 = vunpack.c.h.b16 %v430
        %v582 = vunpack.c.l.b16 %v431
        %v583 = vunpack.c.h.b16 %v431
        %v584 = vunpack.c.l.b16 %v432
        %v585 = vunpack.c.h.b16 %v432
        %v586 = vpack.c.b16 %v556, %v554
        %v587 = vpack.c.b16 %v557, %v555
        %v588 = vpack.c.b16 %v560, %v558
        %v589 = vpack.c.b16 %v561, %v559
        %v590 = vpack.c.b16 %v564, %v562
        %v591 = vpack.c.b16 %v565, %v563
        %v592 = vpack.c.b16 %v568, %v566
        %v593 = vpack.c.b16 %v569, %v567
        %v594 = vpack.c.b16 %v572, %v570
        %v595 = vpack.c.b16 %v573, %v571
        %v596 = vpack.c.b16 %v576, %v574
        %v597 = vpack.c.b16 %v577, %v575
        %v598 = vpack.c.b16 %v580, %v578
        %v599 = vpack.c.b16 %v581, %v579
        %v600 = vpack.c.b16 %v584, %v582
        %v601 = vpack.c.b16 %v585, %v583
        %vm610 = vcmask 130048
        %v612 = vsel %vm610, %v587, 0
        %v615 = vsel %vm610, %v589, 0
        %v618 = vsel %vm610, %v591, 0
        %v621 = vsel %vm610, %v593, 0
        %v624 = vsel %vm610, %v595, 0
        %v627 = vsel %vm610, %v597, 0
        %v630 = vsel %vm610, %v599, 0
        %v633 = vsel %vm610, %v601, 0
        %635 = vmatprep.subr.bf16.mxu0 0
        %636 = vmatpush1.bf16.msra.mxu0 %v433
        %637 = vmatprep.subr.bf16.mxu0 0
        %638 = vmatpush1.bf16.msra.mxu0 %v434
        %639 = vmatprep.subr.bf16.mxu0 0
        %640 = vmatpush1.bf16.msra.mxu0 %v435
        %641 = vmatprep.subr.bf16.mxu0 0
        %642 = vmatpush1.bf16.msra.mxu0 %v436
        %643 = vmatprep.subr.bf16.mxu0 0
        %644 = vmatpush1.bf16.msra.mxu0 %v437
        %645 = vmatprep.subr.bf16.mxu0 0
        %646 = vmatpush1.bf16.msra.mxu0 %v438
        %647 = vmatprep.subr.bf16.mxu0 0
        %648 = vmatpush1.bf16.msra.mxu0 %v439
        %649 = vmatprep.subr.bf16.mxu0 0
        %650 = vmatpush1.bf16.msra.mxu0 %v440
        %651 = vmatprep.subr.bf16.mxu0 0
        %652 = vmatpush1.bf16.msra.mxu0 %v441
        %653 = vmatprep.subr.bf16.mxu0 0
        %654 = vmatpush1.bf16.msra.mxu0 0
        %655 = vmatprep.subr.bf16.mxu0 0
        %656 = vmatpush1.bf16.msra.mxu0 0
        %657 = vmatprep.subr.bf16.mxu0 0
        %658 = vmatpush1.bf16.msra.mxu0 0
        %659 = vmatprep.subr.bf16.mxu0 0
        %660 = vmatpush1.bf16.msra.mxu0 0
        %661 = vmatprep.subr.bf16.mxu0 0
        %662 = vmatpush1.bf16.msra.mxu0 0
        %663 = vmatprep.subr.bf16.mxu0 0
        %664 = vmatpush1.bf16.msra.mxu0 0
        %665 = vmatprep.subr.bf16.mxu0 0
        %666 = vmatpush1.bf16.msra.mxu0 0
        %667 = vmatprep.mubr.bf16.mxu0 %v612
        %668 = vmatmul.mubr.bf16.gmra.mrb[0].mxu0 %v586
        %v669 = vpop.f32.mrb[0].mxu0
        %v670 = vadd.f32 %v461, %v669
        %v671 = vpop.f32.mrb[0].mxu0
        %v672 = vpop.f32.mrb[0].mxu0
        %v673 = vadd.f32 %v466, %v672
        %v674 = vpop.f32.mrb[0].mxu0
        %675 = vmatprep.mubr.bf16.mxu0 %v615
        %676 = vmatmul.mubr.bf16.gmra.mrb[0].mxu0 %v588
        %v677 = vpop.f32.mrb[0].mxu0
        %v678 = vadd.f32 %v471, %v677
        %v679 = vpop.f32.mrb[0].mxu0
        %v680 = vpop.f32.mrb[0].mxu0
        %v681 = vadd.f32 %v476, %v680
        %v682 = vpop.f32.mrb[0].mxu0
        %683 = vmatprep.mubr.bf16.mxu0 %v618
        %684 = vmatmul.mubr.bf16.gmra.mrb[0].mxu0 %v590
        %v685 = vpop.f32.mrb[0].mxu0
        %v686 = vadd.f32 %v481, %v685
        %v687 = vpop.f32.mrb[0].mxu0
        %v688 = vpop.f32.mrb[0].mxu0
        %v689 = vadd.f32 %v486, %v688
        %v690 = vpop.f32.mrb[0].mxu0
        %691 = vmatprep.mubr.bf16.mxu0 %v621
        %692 = vmatmul.mubr.bf16.gmra.mrb[0].mxu0 %v592
        %v693 = vpop.f32.mrb[0].mxu0
        %v694 = vadd.f32 %v491, %v693
        %v695 = vpop.f32.mrb[0].mxu0
        %v696 = vpop.f32.mrb[0].mxu0
        %v697 = vadd.f32 %v496, %v696
        %v698 = vpop.f32.mrb[0].mxu0
        %699 = vmatprep.mubr.bf16.mxu0 %v624
        %700 = vmatmul.mubr.bf16.gmra.mrb[0].mxu0 %v594
        %v701 = vpop.f32.mrb[0].mxu0
        %v702 = vadd.f32 %v501, %v701
        %v703 = vpop.f32.mrb[0].mxu0
        %v704 = vpop.f32.mrb[0].mxu0
        %v705 = vadd.f32 %v506, %v704
        %v706 = vpop.f32.mrb[0].mxu0
        %707 = vmatprep.mubr.bf16.mxu0 %v627
        %708 = vmatmul.mubr.bf16.gmra.mrb[0].mxu0 %v596
        %v709 = vpop.f32.mrb[0].mxu0
        %v710 = vadd.f32 %v511, %v709
        %v711 = vpop.f32.mrb[0].mxu0
        %v712 = vpop.f32.mrb[0].mxu0
        %v713 = vadd.f32 %v516, %v712
        %v714 = vpop.f32.mrb[0].mxu0
        %715 = vmatprep.mubr.bf16.mxu0 %v630
        %716 = vmatmul.mubr.bf16.gmra.mrb[0].mxu0 %v598
        %v717 = vpop.f32.mrb[0].mxu0
        %v718 = vadd.f32 %v521, %v717
        %v719 = vpop.f32.mrb[0].mxu0
        %v720 = vpop.f32.mrb[0].mxu0
        %v721 = vadd.f32 %v526, %v720
        %v722 = vpop.f32.mrb[0].mxu0
        %723 = vmatprep.mubr.bf16.mxu0 %v633
        %724 = vmatmul.mubr.bf16.gmra.mrb[0].mxu0 %v600
        %v725 = vpop.f32.mrb[0].mxu0
        %v726 = vadd.f32 %v531, %v725
        %v727 = vpop.f32.mrb[0].mxu0
        %v728 = vpop.f32.mrb[0].mxu0
        %v729 = vadd.f32 %v536, %v728
        %v730 = vpop.f32.mrb[0].mxu0
        %731 = vdwg.mxu0
        %v732 = vsub.f32 0.0, %v670
        %v733 = vsub.f32 0.0, %v673
        %v734 = vsub.f32 0.0, %v678
        %v735 = vsub.f32 0.0, %v681
        %v736 = vsub.f32 0.0, %v686
        %v737 = vsub.f32 0.0, %v689
        %v738 = vsub.f32 0.0, %v694
        %v739 = vsub.f32 0.0, %v697
        %v740 = vsub.f32 0.0, %v702
        %v741 = vsub.f32 0.0, %v705
        %v742 = vsub.f32 0.0, %v710
        %v743 = vsub.f32 0.0, %v713
        %v744 = vsub.f32 0.0, %v718
        %v745 = vsub.f32 0.0, %v721
        %v746 = vsub.f32 0.0, %v726
        %v747 = vsub.f32 0.0, %v729
        %v748 = vmul.f32 %v732, 1.442695
        %v749 = vpow.pop %v748
        %v750 = vmul.f32 %v733, 1.442695
        %v751 = vpow.pop %v750
        %v752 = vmul.f32 %v734, 1.442695
        %v753 = vpow.pop %v752
        %v754 = vmul.f32 %v735, 1.442695
        %v755 = vpow.pop %v754
        %v756 = vmul.f32 %v736, 1.442695
        %v757 = vpow.pop %v756
        %v758 = vmul.f32 %v737, 1.442695
        %v759 = vpow.pop %v758
        %v760 = vmul.f32 %v738, 1.442695
        %v761 = vpow.pop %v760
        %v762 = vmul.f32 %v739, 1.442695
        %v763 = vpow.pop %v762
        %v764 = vmul.f32 %v740, 1.442695
        %v765 = vpow.pop %v764
        %v766 = vmul.f32 %v741, 1.442695
        %v767 = vpow.pop %v766
        %v768 = vmul.f32 %v742, 1.442695
        %v769 = vpow.pop %v768
        %v770 = vmul.f32 %v743, 1.442695
        %v771 = vpow.pop %v770
        %v772 = vmul.f32 %v744, 1.442695
        %v773 = vpow.pop %v772
        %v774 = vmul.f32 %v745, 1.442695
        %v775 = vpow.pop %v774
        %v776 = vmul.f32 %v746, 1.442695
        %v777 = vpow.pop %v776
        %v778 = vmul.f32 %v747, 1.442695
        %v779 = vpow.pop %v778
        %v780 = vadd.f32 %v749, 1.0
        %v781 = vadd.f32 %v751, 1.0
        %v782 = vadd.f32 %v753, 1.0
        %v783 = vadd.f32 %v755, 1.0
        %v784 = vadd.f32 %v757, 1.0
        %v785 = vadd.f32 %v759, 1.0
        %v786 = vadd.f32 %v761, 1.0
        %v787 = vadd.f32 %v763, 1.0
        %v788 = vadd.f32 %v765, 1.0
        %v789 = vadd.f32 %v767, 1.0
        %v790 = vadd.f32 %v769, 1.0
        %v791 = vadd.f32 %v771, 1.0
        %v792 = vadd.f32 %v773, 1.0
        %v793 = vadd.f32 %v775, 1.0
        %v794 = vadd.f32 %v777, 1.0
        %v795 = vadd.f32 %v779, 1.0
        %v796 = vrcp.pop %v780
        %v797 = vrcp.pop %v781
        %v798 = vrcp.pop %v782
        %v799 = vrcp.pop %v783
        %v800 = vrcp.pop %v784
        %v801 = vrcp.pop %v785
        %v802 = vrcp.pop %v786
        %v803 = vrcp.pop %v787
        %v804 = vrcp.pop %v788
        %v805 = vrcp.pop %v789
        %v806 = vrcp.pop %v790
        %v807 = vrcp.pop %v791
        %v808 = vrcp.pop %v792
        %v809 = vrcp.pop %v793
        %v810 = vrcp.pop %v794
        %v811 = vrcp.pop %v795
        %v812 = vmul.f32 %v670, %v796
        %v813 = vmul.f32 %v673, %v797
        %v814 = vmul.f32 %v678, %v798
        %v815 = vmul.f32 %v681, %v799
        %v816 = vmul.f32 %v686, %v800
        %v817 = vmul.f32 %v689, %v801
        %v818 = vmul.f32 %v694, %v802
        %v819 = vmul.f32 %v697, %v803
        %v820 = vmul.f32 %v702, %v804
        %v821 = vmul.f32 %v705, %v805
        %v822 = vmul.f32 %v710, %v806
        %v823 = vmul.f32 %v713, %v807
        %v824 = vmul.f32 %v718, %v808
        %v825 = vmul.f32 %v721, %v809
        %v826 = vmul.f32 %v726, %v810
        %v827 = vmul.f32 %v729, %v811
        %828 = vst [vmem:[%s136] sm:$0xff] %v812
        %829 = vst [vmem:[%s136 + $0x8] sm:$0xff] %v813
        %830 = vst [vmem:[%s136 + $0x10] sm:$0xff] %v814
        %831 = vst [vmem:[%s136 + $0x18] sm:$0xff] %v815
        %832 = vst [vmem:[%s136 + $0x20] sm:$0xff] %v816
        %833 = vst [vmem:[%s136 + $0x28] sm:$0xff] %v817
        %834 = vst [vmem:[%s136 + $0x30] sm:$0xff] %v818
        %835 = vst [vmem:[%s136 + $0x38] sm:$0xff] %v819
        %836 = vst [vmem:[%s136 + $0x40] sm:$0xff] %v820
        %837 = vst [vmem:[%s136 + $0x48] sm:$0xff] %v821
        %838 = vst [vmem:[%s136 + $0x50] sm:$0xff] %v822
        %839 = vst [vmem:[%s136 + $0x58] sm:$0xff] %v823
        %840 = vst [vmem:[%s136 + $0x60] sm:$0xff] %v824
        %841 = vst [vmem:[%s136 + $0x68] sm:$0xff] %v825
        %842 = vst [vmem:[%s136 + $0x70] sm:$0xff] %v826
        %843 = vst [vmem:[%s136 + $0x78] sm:$0xff] %v827
        %s844 = sand.u32 %s81, 1
        %s845 = scalar_lea.sflag [#allocation6], %s844
        %s846 = sand.u32 %s81, 1
        %s847 = smul.addr %s846, 128
        %s848 = scalar_lea.vmem [#allocation5], %s847
        // Predicated region
        $region111: #{tpu_custom_call.1} parent=27 // pred_check
          %p849 = pneg %p91
        $region112: #{tpu_custom_call.1} parent=27 // pred_check_branch
          %851 = sbr.rel (%p849) target = $region114
        $region113: #{tpu_custom_call.1} parent=27 // pred_region
          %s853 = ssub.s32 2048, 2048
          %854 = vsyncadd %s845, %s853
          %s855 = smul.addr %s21, 48
          %s856 = sadd.s32 %s22, %s855
          %s857 = smul.addr %s856, 128
          %s858 = scalar_lea.hbm %s3, %s857
          %s859 = sshll.u32 %s848, 4
          %s860 = int_to_ptr.vmem [resolvable:$true] %s859
          %865 = dma.vmem_to_hbm [thread:$0]  %s860, 2048, %s858, %s845, 128, 384, 8
        $region114: #{tpu_custom_call.1} parent=27 // pred_fallthru
          _
      $region28: #{tpu_custom_call.1} parent=5 // pred_fallthru
        _
      %p866 = scmp.le.s32.totalorder 2, %s12
      // Predicated region
      $region115: #{tpu_custom_call.1} parent=5 // pred_check
        %p867 = pneg %p866
      $region116: #{tpu_custom_call.1} parent=5 // pred_check_branch
        %869 = sbr.rel (%p867) target = $region118
      $region117: #{tpu_custom_call.1} parent=5 // pred_region
        %s870 = ssub.s32 %s12, 2
        // Predicated region
        $region119: #{tpu_custom_call.1} parent=117 // pred_check
          %p871 = pneg %p97
        $region120: #{tpu_custom_call.1} parent=117 // pred_check_branch
          %873 = sbr.rel (%p871) target = $region122
        $region121: #{tpu_custom_call.1} parent=117 // pred_region
          %s874 = sand.u32 %s82, 1
          %s875 = scalar_lea.sflag [#allocation6], %s874
          %s876 = sand.u32 %s82, 1
          %s877 = smul.addr %s876, 128
          %s878 = scalar_lea.vmem [#allocation5], %s877
          %879 = dma.done %s875, 2048
        $region122: #{tpu_custom_call.1} parent=117 // pred_fallthru
          _
      $region118: #{tpu_custom_call.1} parent=5 // pred_fallthru
        _
    $region6: #{tpu_custom_call.1} parent=1 // loop_footer
      %s16 = sadd.s32 1, %s12
    $region7: #{tpu_custom_call.1} parent=1 // loop_footer_branch
      %11 = sbr.rel target = $region3
    $region8: #{tpu_custom_call.1} parent=1 // loop_exit
      _
    %880 = vsyncpa [#allocation6], 1
    %s881 = scalar_lea.sflag [#allocation6], 1
    %882 = vsyncpa %s881, 1
  %883 = vsyncmov [#allocation4]
  %s884 = vpop.sfrf %883
  %p885 = scmp.eq.s32.totalorder %s884, 0
  %p886 = pneg %p885
  %888 = shalt.err (%p886)
  %s889 = scalar_lea.sflag [#allocation4], 1
  %890 = vsyncmov %s889
  %s891 = vpop.sfrf %890
  %p892 = scmp.eq.s32.totalorder %s891, 0
  %p893 = pneg %p892
  %895 = shalt.err (%p893)

</llo_original>
